<compile_context>
chip_gen: v6e
topology: v6e:2x2x1
jax: 0.10.0
libtpu: 0.0.40
codegen_flags: <defaults>
</compile_context>

<pallas_src>
import jax
import jax.numpy as jnp
import numpy as np
from jax.experimental import pallas as pl
from jax.experimental.pallas import tpu as pltpu

VMEM_SPEC = pl.BlockSpec(memory_space=pltpu.MemorySpace.VMEM)


# -----------------------------------------------------------------------------
# Pallas kernel: both SAGEConv layers + ReLUs fused, everything resident in VMEM
# -----------------------------------------------------------------------------
def _graphsage_fused_kernel(adj_ref, x_ref,
                            wl1_ref, bl1_ref, wr1_ref,
                            wl2_ref, bl2_ref, wr2_ref,
                            o_ref):
    # adj: (N, N) row-normalized;  x: (N, Fin)
    # wl*: (Fin, Fout) neighbor (aggregated) path, with bias bl* (1, Fout)
    # wr*: (Fin, Fout) root/self path, no bias          (matches PyG SAGEConv)
    adj = adj_ref[...]
    x = x_ref[...]

    # ---- SAGEConv 1 + ReLU ----
    agg1 = jnp.dot(adj, x, preferred_element_type=jnp.float32)      # mean aggregation
    h = (jnp.dot(agg1, wl1_ref[...], preferred_element_type=jnp.float32)
         + bl1_ref[...]
         + jnp.dot(x, wr1_ref[...], preferred_element_type=jnp.float32))
    h = jnp.maximum(h, 0.0)

    # ---- SAGEConv 2 + ReLU ----   (h never leaves VMEM)
    agg2 = jnp.dot(adj, h, preferred_element_type=jnp.float32)
    y = (jnp.dot(agg2, wl2_ref[...], preferred_element_type=jnp.float32)
         + bl2_ref[...]
         + jnp.dot(h, wr2_ref[...], preferred_element_type=jnp.float32))
    o_ref[...] = jnp.maximum(y, 0.0).astype(o_ref.dtype)


# -----------------------------------------------------------------------------
# glue: edge_index -> dense row-normalized adjacency (PyG mean aggregation)
# -----------------------------------------------------------------------------
def build_mean_adj(edge_index, n_nodes):
    # Messages flow src -> dst (edge_index[0] -> edge_index[1]); rows are the
    # destination nodes, normalized by their in-degree (isolated nodes -> 0 row).
    # TODO(synk): the data-dependent scatter-add itself has no clean small-scale
    # Pallas equivalent, so the adjacency is built once in plain JAX.
    src, dst = edge_index[0], edge_index[1]
    adj = jnp.zeros((n_nodes, n_nodes), jnp.float32).at[dst, src].add(1.0)
    deg = jnp.sum(adj, axis=1, keepdims=True)
    return adj / jnp.maximum(deg, 1.0)


@jax.jit
def graphsage_forward(params, x, edge_index):
    n_nodes = x.shape[0]
    f_out = params['wl2'].shape[1]
    adj = build_mean_adj(edge_index, n_nodes)
    return pl.pallas_call(
        _graphsage_fused_kernel,
        out_shape=jax.ShapeDtypeStruct((n_nodes, f_out), jnp.float32),
        in_specs=[VMEM_SPEC] * 8,
        out_specs=VMEM_SPEC,
    )(adj, x,
      params['wl1'], params['bl1'], params['wr1'],
      params['wl2'], params['bl2'], params['wr2'])


# -----------------------------------------------------------------------------
# deterministic parameter init (PyG SAGEConv layout, pre-transposed for the kernel)
# -----------------------------------------------------------------------------
def _init_sage_conv(key, fan_in, fan_out):
    # lin_l: Linear(fan_in, fan_out, bias=True)  -> aggregated-neighbor path
    # lin_r: Linear(fan_in, fan_out, bias=False) -> root/self path
    # Stored pre-transposed (in, out) with (1, out) bias so no per-call reshapes.
    kl, kb, kr = jax.random.split(key, 3)
    bound = 1.0 / np.sqrt(fan_in)
    wl = jax.random.uniform(kl, (fan_in, fan_out), jnp.float32, -bound, bound)
    bl = jax.random.uniform(kb, (1, fan_out), jnp.float32, -bound, bound)
    wr = jax.random.uniform(kr, (fan_in, fan_out), jnp.float32, -bound, bound)
    return wl, bl, wr


def init_graphsage_params(key, param_dict):
    k1, k2 = jax.random.split(key)
    wl1, bl1, wr1 = _init_sage_conv(k1, param_dict['input_features'],
                                    param_dict['hidden_features'])
    wl2, bl2, wr2 = _init_sage_conv(k2, param_dict['hidden_features'],
                                    param_dict['output_features'])
    return dict(wl1=wl1, bl1=bl1, wr1=wr1, wl2=wl2, bl2=bl2, wr2=wr2)


# -----------------------------------------------------------------------------
# pure-JAX reference (same math, no Pallas) for a correctness check
# -----------------------------------------------------------------------------
def graphsage_reference(params, x, edge_index):
    adj = build_mean_adj(edge_index, x.shape[0])
    h = jnp.maximum(adj @ x @ params['wl1'] + params['bl1'] + x @ params['wr1'], 0.0)
    y = jnp.maximum(adj @ h @ params['wl2'] + params['bl2'] + h @ params['wr2'], 0.0)
    return y


# -----------------------------------------------------------------------------
if __name__ == "__main__":
    key = jax.random.PRNGKey(0)
    k_params, k_x, k_src, k_dst = jax.random.split(key, 4)

    param_dict = dict(input_features=16, hidden_features=16, output_features=16)
    n_nodes, n_edges = 16, 48

    params = init_graphsage_params(k_params, param_dict)
    x = jax.random.normal(k_x, (n_nodes, param_dict['input_features']), jnp.float32)
    src = jax.random.randint(k_src, (n_edges,), 0, n_nodes, dtype=jnp.int32)
    dst = jax.random.randint(k_dst, (n_edges,), 0, n_nodes, dtype=jnp.int32)
    edge_index = jnp.stack([src, dst], axis=0)

    out = graphsage_forward(params, x, edge_index)
    out = jax.block_until_ready(out)

    assert out.shape == (n_nodes, param_dict['output_features'])
    assert bool(jnp.all(jnp.isfinite(out)))
    assert bool(jnp.all(out >= 0.0))          # ReLU output is non-negative

    ref = graphsage_reference(params, x, edge_index)
    np.testing.assert_allclose(np.asarray(out), np.asarray(ref), rtol=5e-2, atol=5e-2)

    print("KERNEL_OK")
</pallas_src>

<mosaic_0001>
module attributes {stable_mosaic.version = 11 : i64} {
  func.func private @main(%arg0: i32) attributes {dimension_semantics = [#tpu.dimension_semantics<core_parallel>], iteration_bounds = array<i64: 2>, tpu.core_type = #tpu.core_type<sc_scalar_subcore>, window_params = []} {
    return
  }
}

module attributes {stable_mosaic.version = 11 : i64} {
  func.func private @main(%arg0: i32) attributes {dimension_semantics = [#tpu.dimension_semantics<core_parallel>], iteration_bounds = array<i64: 2>, tpu.core_type = #tpu.core_type<sc_scalar_subcore>, window_params = []} {
    return
  }
}

module attributes {stable_mosaic.version = 11 : i64} {
  func.func @_graphsage_fused_kernel(%arg0: memref<16x16xf32, #tpu.memory_space<vmem>>, %arg1: memref<16x16xf32, #tpu.memory_space<vmem>>, %arg2: memref<16x16xf32, #tpu.memory_space<vmem>>, %arg3: memref<1x16xf32, #tpu.memory_space<vmem>>, %arg4: memref<16x16xf32, #tpu.memory_space<vmem>>, %arg5: memref<16x16xf32, #tpu.memory_space<vmem>>, %arg6: memref<1x16xf32, #tpu.memory_space<vmem>>, %arg7: memref<16x16xf32, #tpu.memory_space<vmem>>, %arg8: memref<16x16xf32, #tpu.memory_space<vmem>>) attributes {dimension_semantics = [], scalar_prefetch = 0 : i64, scratch_operands = 0 : i64, tpu.core_type = #tpu.core_type<tc>} {
    %c0 = arith.constant 0 : index
    %c0_0 = arith.constant 0 : index
    %0 = vector.load %arg0[%c0, %c0_0] : memref<16x16xf32, #tpu.memory_space<vmem>>, vector<16x16xf32>
    %c0_1 = arith.constant 0 : index
    %c0_2 = arith.constant 0 : index
    %1 = vector.load %arg1[%c0_1, %c0_2] : memref<16x16xf32, #tpu.memory_space<vmem>>, vector<16x16xf32>
    %cst = arith.constant dense<0.000000e+00> : vector<16x16xf32>
    %2 = tpu.matmul %0, %1, %cst {dimension_numbers = #tpu.dot_dimension_numbers<[1], [0], [0], [1], [0, 0, 1, 1], [], []>} : vector<16x16xf32>, vector<16x16xf32>, vector<16x16xf32> -> vector<16x16xf32>
    %c0_3 = arith.constant 0 : index
    %c0_4 = arith.constant 0 : index
    %3 = vector.load %arg2[%c0_3, %c0_4] : memref<16x16xf32, #tpu.memory_space<vmem>>, vector<16x16xf32>
    %cst_5 = arith.constant dense<0.000000e+00> : vector<16x16xf32>
    %4 = tpu.matmul %2, %3, %cst_5 {dimension_numbers = #tpu.dot_dimension_numbers<[1], [0], [0], [1], [0, 0, 1, 1], [], []>} : vector<16x16xf32>, vector<16x16xf32>, vector<16x16xf32> -> vector<16x16xf32>
    %c0_6 = arith.constant 0 : index
    %c0_7 = arith.constant 0 : index
    %5 = vector.load %arg3[%c0_6, %c0_7] : memref<1x16xf32, #tpu.memory_space<vmem>>, vector<1x16xf32>
    %6 = vector.broadcast %5 : vector<1x16xf32> to vector<16x16xf32>
    %7 = arith.addf %4, %6 : vector<16x16xf32>
    %c0_8 = arith.constant 0 : index
    %c0_9 = arith.constant 0 : index
    %8 = vector.load %arg4[%c0_8, %c0_9] : memref<16x16xf32, #tpu.memory_space<vmem>>, vector<16x16xf32>
    %cst_10 = arith.constant dense<0.000000e+00> : vector<16x16xf32>
    %9 = tpu.matmul %1, %8, %cst_10 {dimension_numbers = #tpu.dot_dimension_numbers<[1], [0], [0], [1], [0, 0, 1, 1], [], []>} : vector<16x16xf32>, vector<16x16xf32>, vector<16x16xf32> -> vector<16x16xf32>
    %10 = arith.addf %7, %9 : vector<16x16xf32>
    %cst_11 = arith.constant 0.000000e+00 : f32
    %11 = vector.broadcast %cst_11 : f32 to vector<16x16xf32>
    %12 = arith.maximumf %10, %11 : vector<16x16xf32>
    %cst_12 = arith.constant dense<0.000000e+00> : vector<16x16xf32>
    %13 = tpu.matmul %0, %12, %cst_12 {dimension_numbers = #tpu.dot_dimension_numbers<[1], [0], [0], [1], [0, 0, 1, 1], [], []>} : vector<16x16xf32>, vector<16x16xf32>, vector<16x16xf32> -> vector<16x16xf32>
    %c0_13 = arith.constant 0 : index
    %c0_14 = arith.constant 0 : index
    %14 = vector.load %arg5[%c0_13, %c0_14] : memref<16x16xf32, #tpu.memory_space<vmem>>, vector<16x16xf32>
    %cst_15 = arith.constant dense<0.000000e+00> : vector<16x16xf32>
    %15 = tpu.matmul %13, %14, %cst_15 {dimension_numbers = #tpu.dot_dimension_numbers<[1], [0], [0], [1], [0, 0, 1, 1], [], []>} : vector<16x16xf32>, vector<16x16xf32>, vector<16x16xf32> -> vector<16x16xf32>
    %c0_16 = arith.constant 0 : index
    %c0_17 = arith.constant 0 : index
    %16 = vector.load %arg6[%c0_16, %c0_17] : memref<1x16xf32, #tpu.memory_space<vmem>>, vector<1x16xf32>
    %17 = vector.broadcast %16 : vector<1x16xf32> to vector<16x16xf32>
    %18 = arith.addf %15, %17 : vector<16x16xf32>
    %c0_18 = arith.constant 0 : index
    %c0_19 = arith.constant 0 : index
    %19 = vector.load %arg7[%c0_18, %c0_19] : memref<16x16xf32, #tpu.memory_space<vmem>>, vector<16x16xf32>
    %cst_20 = arith.constant dense<0.000000e+00> : vector<16x16xf32>
    %20 = tpu.matmul %12, %19, %cst_20 {dimension_numbers = #tpu.dot_dimension_numbers<[1], [0], [0], [1], [0, 0, 1, 1], [], []>} : vector<16x16xf32>, vector<16x16xf32>, vector<16x16xf32> -> vector<16x16xf32>
    %21 = arith.addf %18, %20 : vector<16x16xf32>
    %cst_21 = arith.constant 0.000000e+00 : f32
    %22 = vector.broadcast %cst_21 : f32 to vector<16x16xf32>
    %23 = arith.maximumf %21, %22 : vector<16x16xf32>
    %c0_22 = arith.constant 0 : index
    %c0_23 = arith.constant 0 : index
    %24 = vector.load %arg8[%c0_22, %c0_23] : memref<16x16xf32, #tpu.memory_space<vmem>>, vector<16x16xf32>
    tpu.vector_store %arg8[%c0_22, %c0_23], %23 {strides = array<i32>} : memref<16x16xf32, #tpu.memory_space<vmem>>, vector<16x16xf32>,
    return
  }
}

</mosaic_0001>

<llo_original>
// kernel: graphsage_forward.1
$region0: #{graphsage_forward.1}
  #allocation0 [shape = 'u32[]', space=smem, size = 0x4, offset = 0x4, fixed_abs, tag = 'smem constant byte address 0x4 - core index']
  #allocation1 [shape = 'u32[144,128]{1,0:T(1,128)}', space=vmem, size = 0x12000, scoped, tag = 'internal scratch']
  %s0 = inlined_call_operand.vmem [shape: f32[16,16], index: 0, kind: input, shape index: {}]
  %s1 = inlined_call_operand.vmem [shape: f32[16,16], index: 1, kind: input, shape index: {}]
  %s2 = inlined_call_operand.vmem [shape: f32[16,16], index: 2, kind: input, shape index: {}]
  %s3 = inlined_call_operand.vmem [shape: f32[1,16], index: 3, kind: input, shape index: {}]
  %s4 = inlined_call_operand.vmem [shape: f32[16,16], index: 4, kind: input, shape index: {}]
  %s5 = inlined_call_operand.vmem [shape: f32[16,16], index: 5, kind: input, shape index: {}]
  %s6 = inlined_call_operand.vmem [shape: f32[1,16], index: 6, kind: input, shape index: {}]
  %s7 = inlined_call_operand.vmem [shape: f32[16,16], index: 7, kind: input, shape index: {}]
  %s8 = inlined_call_operand.hbm [shape: f32[16,16], index: 8, kind: output, shape index: {}]
  %s9 = sld [smem:[#allocation0]]
  $region42: #{graphsage_forward.1} parent=0
    _
  %s11 = ssub.s32 1, %s9
  %s12 = scalar_select 0, %s11, %s9
  $region1: #{graphsage_forward.1} parent=0
    #allocation2 [shape = 'u8[8192]{0}', space=vmem, size = 0x2000, scoped, tag = 'output window, operand 0, single buffered']
    #allocation3 [shape = 's32[1]{0}', space=sflag, size = 0x4, scoped, tag = 'scoped memory for graphsage_forward.1']
    %13 = vsyncpa [#allocation3], 0
    // Predicated region
    $region2: #{graphsage_forward.1} parent=1 // pred_check
      _
    $region3: #{graphsage_forward.1} parent=1 // pred_check_branch
      %15 = sbr.rel (0) target = $region5
    $region4: #{graphsage_forward.1} parent=1 // pred_region
      _
    $region5: #{graphsage_forward.1} parent=1 // pred_fallthru
      _
    // Predicated region
    $region6: #{graphsage_forward.1} parent=1 // pred_check
      _
    $region7: #{graphsage_forward.1} parent=1 // pred_check_branch
      %17 = sbr.rel (0) target = $region9
    $region8: #{graphsage_forward.1} parent=1 // pred_region
      _
    $region9: #{graphsage_forward.1} parent=1 // pred_fallthru
      _
    // Predicated region
    $region10: #{graphsage_forward.1} parent=1 // pred_check
      _
    $region11: #{graphsage_forward.1} parent=1 // pred_check_branch
      %19 = sbr.rel (0) target = $region13
    $region12: #{graphsage_forward.1} parent=1 // pred_region
      _
    $region13: #{graphsage_forward.1} parent=1 // pred_fallthru
      _
    // Predicated region
    $region14: #{graphsage_forward.1} parent=1 // pred_check
      _
    $region15: #{graphsage_forward.1} parent=1 // pred_check_branch
      %21 = sbr.rel (0) target = $region17
    $region16: #{graphsage_forward.1} parent=1 // pred_region
      _
    $region17: #{graphsage_forward.1} parent=1 // pred_fallthru
      _
    // Predicated region
    $region18: #{graphsage_forward.1} parent=1 // pred_check
      _
    $region19: #{graphsage_forward.1} parent=1 // pred_check_branch
      %23 = sbr.rel (0) target = $region21
    $region20: #{graphsage_forward.1} parent=1 // pred_region
      _
    $region21: #{graphsage_forward.1} parent=1 // pred_fallthru
      _
    // Predicated region
    $region22: #{graphsage_forward.1} parent=1 // pred_check
      _
    $region23: #{graphsage_forward.1} parent=1 // pred_check_branch
      %25 = sbr.rel (0) target = $region25
    $region24: #{graphsage_forward.1} parent=1 // pred_region
      _
    $region25: #{graphsage_forward.1} parent=1 // pred_fallthru
      _
    // Predicated region
    $region26: #{graphsage_forward.1} parent=1 // pred_check
      _
    $region27: #{graphsage_forward.1} parent=1 // pred_check_branch
      %27 = sbr.rel (0) target = $region29
    $region28: #{graphsage_forward.1} parent=1 // pred_region
      _
    $region29: #{graphsage_forward.1} parent=1 // pred_fallthru
      _
    // Predicated region
    $region30: #{graphsage_forward.1} parent=1 // pred_check
      _
    $region31: #{graphsage_forward.1} parent=1 // pred_check_branch
      %29 = sbr.rel (0) target = $region33
    $region32: #{graphsage_forward.1} parent=1 // pred_region
      _
    $region33: #{graphsage_forward.1} parent=1 // pred_fallthru
      _
    %v30 = vld [vmem:[%s0] sm:$0xff]
    %v31 = vld [vmem:[%s0 + $0x8] sm:$0xff]
    %v32 = vld [vmem:[%s1] sm:$0xff]
    %v33 = vld [vmem:[%s1 + $0x8] sm:$0xff]
    %vm34 = vcmask 130048
    %v36 = vsel %vm34, %v30, 0
    %v39 = vsel %vm34, %v31, 0
    %41 = vmatprep.subr.mxu0 0.0
    %42 = vmatpush1.msra.mxu0 0.0
    %43 = vmatprep.subr.mxu0 0.0
    %44 = vmatpush1.msra.mxu0 0.0
    %45 = vmatprep.subr.mxu0 0.0
    %46 = vmatpush1.msra.mxu0 0.0
    %47 = vmatprep.subr.mxu0 0.0
    %48 = vmatpush1.msra.mxu0 0.0
    %49 = vmatprep.subr.mxu0 0.0
    %50 = vmatpush1.msra.mxu0 0.0
    %51 = vmatprep.subr.mxu0 0.0
    %52 = vmatpush1.msra.mxu0 0.0
    %53 = vmatprep.subr.mxu0 0.0
    %54 = vmatpush1.msra.mxu0 0.0
    %55 = vmatprep.subr.mxu0 0.0
    %56 = vmatpush1.msra.mxu0 0.0
    %57 = vmatprep.subr.mxu0 0.0
    %58 = vmatpush1.msra.mxu0 0.0
    %59 = vmatprep.subr.mxu0 0.0
    %60 = vmatpush1.msra.mxu0 0.0
    %61 = vmatprep.subr.mxu0 0.0
    %62 = vmatpush1.msra.mxu0 0.0
    %63 = vmatprep.subr.mxu0 0.0
    %64 = vmatpush1.msra.mxu0 0.0
    %65 = vmatprep.subr.mxu0 0.0
    %66 = vmatpush1.msra.mxu0 0.0
    %67 = vmatprep.subr.mxu0 0.0
    %68 = vmatpush1.msra.mxu0 0.0
    %69 = vmatprep.subr.mxu0 0.0
    %70 = vmatpush1.msra.mxu0 %v33
    %71 = vmatprep.subr.mxu0 0.0
    %72 = vmatpush1.msra.mxu0 %v32
    %73 = vmatprep.subr.mxu0 0.0
    %74 = vmatpush2.msra.mxu0 0.0
    %75 = vmatprep.subr.mxu0 0.0
    %76 = vmatpush2.msra.mxu0 0.0
    %77 = vmatprep.subr.mxu0 0.0
    %78 = vmatpush2.msra.mxu0 0.0
    %79 = vmatprep.subr.mxu0 0.0
    %80 = vmatpush2.msra.mxu0 0.0
    %81 = vmatprep.subr.mxu0 0.0
    %82 = vmatpush2.msra.mxu0 0.0
    %83 = vmatprep.subr.mxu0 0.0
    %84 = vmatpush2.msra.mxu0 0.0
    %85 = vmatprep.subr.mxu0 0.0
    %86 = vmatpush2.msra.mxu0 0.0
    %87 = vmatprep.subr.mxu0 0.0
    %88 = vmatpush2.msra.mxu0 0.0
    %89 = vmatprep.subr.mxu0 0.0
    %90 = vmatpush2.msra.mxu0 0.0
    %91 = vmatprep.subr.mxu0 0.0
    %92 = vmatpush2.msra.mxu0 0.0
    %93 = vmatprep.subr.mxu0 0.0
    %94 = vmatpush2.msra.mxu0 0.0
    %95 = vmatprep.subr.mxu0 0.0
    %96 = vmatpush2.msra.mxu0 0.0
    %97 = vmatprep.subr.mxu0 0.0
    %98 = vmatpush2.msra.mxu0 0.0
    %99 = vmatprep.subr.mxu0 0.0
    %100 = vmatpush2.msra.mxu0 0.0
    %101 = vmatprep.subr.mxu0 0.0
    %102 = vmatpush2.msra.mxu0 0.0
    %103 = vmatprep.subr.mxu0 0.0
    %104 = vmatpush2.msra.mxu0 0.0
    %105 = vmatprep.mubr.f32.mxu0 0.0
    %106 = vmatmul.mubr.f32.gmra.mxu0 %v36
    %v107 = vpop.f32.mrf.mxu0
    %v108 = vadd.f32 0.0, %v107
    %v109 = vpop.f32.mrf.mxu0
    %110 = vmatprep.mubr.f32.mxu0 0.0
    %111 = vmatmul.mubr.f32.gmra.mxu0 %v39
    %v112 = vpop.f32.mrf.mxu0
    %v113 = vadd.f32 0.0, %v112
    %v114 = vpop.f32.mrf.mxu0
    %115 = vdwg.mxu0
    %v116 = vld [vmem:[%s2] sm:$0xff]
    %v117 = vld [vmem:[%s2 + $0x8] sm:$0xff]
    %v118 = vld [vmem:[%s3] sm:$0x1]
    %v120 = vlaneseq
    %v121 = vshrl.u32 %v120, 7
    %v122 = vsub.s32 0, %v121
    %v123 = vrot.slane %v118, %v122
    %v126 = vsel %vm34, %v108, 0
    %v129 = vsel %vm34, %v113, 0
    %131 = vmatprep.subr.mxu0 0.0
    %132 = vmatpush1.msra.mxu0 0.0
    %133 = vmatprep.subr.mxu0 0.0
    %134 = vmatpush1.msra.mxu0 0.0
    %135 = vmatprep.subr.mxu0 0.0
    %136 = vmatpush1.msra.mxu0 0.0
    %137 = vmatprep.subr.mxu0 0.0
    %138 = vmatpush1.msra.mxu0 0.0
    %139 = vmatprep.subr.mxu0 0.0
    %140 = vmatpush1.msra.mxu0 0.0
    %141 = vmatprep.subr.mxu0 0.0
    %142 = vmatpush1.msra.mxu0 0.0
    %143 = vmatprep.subr.mxu0 0.0
    %144 = vmatpush1.msra.mxu0 0.0
    %145 = vmatprep.subr.mxu0 0.0
    %146 = vmatpush1.msra.mxu0 0.0
    %147 = vmatprep.subr.mxu0 0.0
    %148 = vmatpush1.msra.mxu0 0.0
    %149 = vmatprep.subr.mxu0 0.0
    %150 = vmatpush1.msra.mxu0 0.0
    %151 = vmatprep.subr.mxu0 0.0
    %152 = vmatpush1.msra.mxu0 0.0
    %153 = vmatprep.subr.mxu0 0.0
    %154 = vmatpush1.msra.mxu0 0.0
    %155 = vmatprep.subr.mxu0 0.0
    %156 = vmatpush1.msra.mxu0 0.0
    %157 = vmatprep.subr.mxu0 0.0
    %158 = vmatpush1.msra.mxu0 0.0
    %159 = vmatprep.subr.mxu0 0.0
    %160 = vmatpush1.msra.mxu0 %v117
    %161 = vmatprep.subr.mxu0 0.0
    %162 = vmatpush1.msra.mxu0 %v116
    %163 = vmatprep.subr.mxu0 0.0
    %164 = vmatpush2.msra.mxu0 0.0
    %165 = vmatprep.subr.mxu0 0.0
    %166 = vmatpush2.msra.mxu0 0.0
    %167 = vmatprep.subr.mxu0 0.0
    %168 = vmatpush2.msra.mxu0 0.0
    %169 = vmatprep.subr.mxu0 0.0
    %170 = vmatpush2.msra.mxu0 0.0
    %171 = vmatprep.subr.mxu0 0.0
    %172 = vmatpush2.msra.mxu0 0.0
    %173 = vmatprep.subr.mxu0 0.0
    %174 = vmatpush2.msra.mxu0 0.0
    %175 = vmatprep.subr.mxu0 0.0
    %176 = vmatpush2.msra.mxu0 0.0
    %177 = vmatprep.subr.mxu0 0.0
    %178 = vmatpush2.msra.mxu0 0.0
    %179 = vmatprep.subr.mxu0 0.0
    %180 = vmatpush2.msra.mxu0 0.0
    %181 = vmatprep.subr.mxu0 0.0
    %182 = vmatpush2.msra.mxu0 0.0
    %183 = vmatprep.subr.mxu0 0.0
    %184 = vmatpush2.msra.mxu0 0.0
    %185 = vmatprep.subr.mxu0 0.0
    %186 = vmatpush2.msra.mxu0 0.0
    %187 = vmatprep.subr.mxu0 0.0
    %188 = vmatpush2.msra.mxu0 0.0
    %189 = vmatprep.subr.mxu0 0.0
    %190 = vmatpush2.msra.mxu0 0.0
    %191 = vmatprep.subr.mxu0 0.0
    %192 = vmatpush2.msra.mxu0 0.0
    %193 = vmatprep.subr.mxu0 0.0
    %194 = vmatpush2.msra.mxu0 0.0
    %195 = vmatprep.mubr.f32.mxu0 0.0
    %196 = vmatmul.mubr.f32.gmra.mxu0 %v126
    %v197 = vpop.f32.mrf.mxu0
    %v198 = vadd.f32 %v123, %v197
    %v199 = vpop.f32.mrf.mxu0
    %200 = vmatprep.mubr.f32.mxu0 0.0
    %201 = vmatmul.mubr.f32.gmra.mxu0 %v129
    %v202 = vpop.f32.mrf.mxu0
    %v203 = vadd.f32 %v123, %v202
    %v204 = vpop.f32.mrf.mxu0
    %205 = vdwg.mxu0
    %v206 = vld [vmem:[%s4] sm:$0xff]
    %v207 = vld [vmem:[%s4 + $0x8] sm:$0xff]
    %v209 = vsel %vm34, %v32, 0
    %v212 = vsel %vm34, %v33, 0
    %214 = vmatprep.subr.mxu0 0.0
    %215 = vmatpush1.msra.mxu0 0.0
    %216 = vmatprep.subr.mxu0 0.0
    %217 = vmatpush1.msra.mxu0 0.0
    %218 = vmatprep.subr.mxu0 0.0
    %219 = vmatpush1.msra.mxu0 0.0
    %220 = vmatprep.subr.mxu0 0.0
    %221 = vmatpush1.msra.mxu0 0.0
    %222 = vmatprep.subr.mxu0 0.0
    %223 = vmatpush1.msra.mxu0 0.0
    %224 = vmatprep.subr.mxu0 0.0
    %225 = vmatpush1.msra.mxu0 0.0
    %226 = vmatprep.subr.mxu0 0.0
    %227 = vmatpush1.msra.mxu0 0.0
    %228 = vmatprep.subr.mxu0 0.0
    %229 = vmatpush1.msra.mxu0 0.0
    %230 = vmatprep.subr.mxu0 0.0
    %231 = vmatpush1.msra.mxu0 0.0
    %232 = vmatprep.subr.mxu0 0.0
    %233 = vmatpush1.msra.mxu0 0.0
    %234 = vmatprep.subr.mxu0 0.0
    %235 = vmatpush1.msra.mxu0 0.0
    %236 = vmatprep.subr.mxu0 0.0
    %237 = vmatpush1.msra.mxu0 0.0
    %238 = vmatprep.subr.mxu0 0.0
    %239 = vmatpush1.msra.mxu0 0.0
    %240 = vmatprep.subr.mxu0 0.0
    %241 = vmatpush1.msra.mxu0 0.0
    %242 = vmatprep.subr.mxu0 0.0
    %243 = vmatpush1.msra.mxu0 %v207
    %244 = vmatprep.subr.mxu0 0.0
    %245 = vmatpush1.msra.mxu0 %v206
    %246 = vmatprep.subr.mxu0 0.0
    %247 = vmatpush2.msra.mxu0 0.0
    %248 = vmatprep.subr.mxu0 0.0
    %249 = vmatpush2.msra.mxu0 0.0
    %250 = vmatprep.subr.mxu0 0.0
    %251 = vmatpush2.msra.mxu0 0.0
    %252 = vmatprep.subr.mxu0 0.0
    %253 = vmatpush2.msra.mxu0 0.0
    %254 = vmatprep.subr.mxu0 0.0
    %255 = vmatpush2.msra.mxu0 0.0
    %256 = vmatprep.subr.mxu0 0.0
    %257 = vmatpush2.msra.mxu0 0.0
    %258 = vmatprep.subr.mxu0 0.0
    %259 = vmatpush2.msra.mxu0 0.0
    %260 = vmatprep.subr.mxu0 0.0
    %261 = vmatpush2.msra.mxu0 0.0
    %262 = vmatprep.subr.mxu0 0.0
    %263 = vmatpush2.msra.mxu0 0.0
    %264 = vmatprep.subr.mxu0 0.0
    %265 = vmatpush2.msra.mxu0 0.0
    %266 = vmatprep.subr.mxu0 0.0
    %267 = vmatpush2.msra.mxu0 0.0
    %268 = vmatprep.subr.mxu0 0.0
    %269 = vmatpush2.msra.mxu0 0.0
    %270 = vmatprep.subr.mxu0 0.0
    %271 = vmatpush2.msra.mxu0 0.0
    %272 = vmatprep.subr.mxu0 0.0
    %273 = vmatpush2.msra.mxu0 0.0
    %274 = vmatprep.subr.mxu0 0.0
    %275 = vmatpush2.msra.mxu0 0.0
    %276 = vmatprep.subr.mxu0 0.0
    %277 = vmatpush2.msra.mxu0 0.0
    %278 = vmatprep.mubr.f32.mxu0 0.0
    %279 = vmatmul.mubr.f32.gmra.mxu0 %v209
    %v280 = vpop.f32.mrf.mxu0
    %v281 = vadd.f32 0.0, %v280
    %v282 = vpop.f32.mrf.mxu0
    %283 = vmatprep.mubr.f32.mxu0 0.0
    %284 = vmatmul.mubr.f32.gmra.mxu0 %v212
    %v285 = vpop.f32.mrf.mxu0
    %v286 = vadd.f32 0.0, %v285
    %v287 = vpop.f32.mrf.mxu0
    %288 = vdwg.mxu0
    %v289 = vadd.f32 %v198, %v281
    %v290 = vadd.f32 %v203, %v286
    %v291 = vmax.f32 %v289, 0.0
    %v292 = vmax.f32 %v290, 0.0
    %293 = vmatprep.subr.mxu0 0.0
    %294 = vmatpush1.msra.mxu0 0.0
    %295 = vmatprep.subr.mxu0 0.0
    %296 = vmatpush1.msra.mxu0 0.0
    %297 = vmatprep.subr.mxu0 0.0
    %298 = vmatpush1.msra.mxu0 0.0
    %299 = vmatprep.subr.mxu0 0.0
    %300 = vmatpush1.msra.mxu0 0.0
    %301 = vmatprep.subr.mxu0 0.0
    %302 = vmatpush1.msra.mxu0 0.0
    %303 = vmatprep.subr.mxu0 0.0
    %304 = vmatpush1.msra.mxu0 0.0
    %305 = vmatprep.subr.mxu0 0.0
    %306 = vmatpush1.msra.mxu0 0.0
    %307 = vmatprep.subr.mxu0 0.0
    %308 = vmatpush1.msra.mxu0 0.0
    %309 = vmatprep.subr.mxu0 0.0
    %310 = vmatpush1.msra.mxu0 0.0
    %311 = vmatprep.subr.mxu0 0.0
    %312 = vmatpush1.msra.mxu0 0.0
    %313 = vmatprep.subr.mxu0 0.0
    %314 = vmatpush1.msra.mxu0 0.0
    %315 = vmatprep.subr.mxu0 0.0
    %316 = vmatpush1.msra.mxu0 0.0
    %317 = vmatprep.subr.mxu0 0.0
    %318 = vmatpush1.msra.mxu0 0.0
    %319 = vmatprep.subr.mxu0 0.0
    %320 = vmatpush1.msra.mxu0 0.0
    %321 = vmatprep.subr.mxu0 0.0
    %322 = vmatpush1.msra.mxu0 %v292
    %323 = vmatprep.subr.mxu0 0.0
    %324 = vmatpush1.msra.mxu0 %v291
    %325 = vmatprep.subr.mxu0 0.0
    %326 = vmatpush2.msra.mxu0 0.0
    %327 = vmatprep.subr.mxu0 0.0
    %328 = vmatpush2.msra.mxu0 0.0
    %329 = vmatprep.subr.mxu0 0.0
    %330 = vmatpush2.msra.mxu0 0.0
    %331 = vmatprep.subr.mxu0 0.0
    %332 = vmatpush2.msra.mxu0 0.0
    %333 = vmatprep.subr.mxu0 0.0
    %334 = vmatpush2.msra.mxu0 0.0
    %335 = vmatprep.subr.mxu0 0.0
    %336 = vmatpush2.msra.mxu0 0.0
    %337 = vmatprep.subr.mxu0 0.0
    %338 = vmatpush2.msra.mxu0 0.0
    %339 = vmatprep.subr.mxu0 0.0
    %340 = vmatpush2.msra.mxu0 0.0
    %341 = vmatprep.subr.mxu0 0.0
    %342 = vmatpush2.msra.mxu0 0.0
    %343 = vmatprep.subr.mxu0 0.0
    %344 = vmatpush2.msra.mxu0 0.0
    %345 = vmatprep.subr.mxu0 0.0
    %346 = vmatpush2.msra.mxu0 0.0
    %347 = vmatprep.subr.mxu0 0.0
    %348 = vmatpush2.msra.mxu0 0.0
    %349 = vmatprep.subr.mxu0 0.0
    %350 = vmatpush2.msra.mxu0 0.0
    %351 = vmatprep.subr.mxu0 0.0
    %352 = vmatpush2.msra.mxu0 0.0
    %353 = vmatprep.subr.mxu0 0.0
    %354 = vmatpush2.msra.mxu0 0.0
    %355 = vmatprep.subr.mxu0 0.0
    %356 = vmatpush2.msra.mxu0 0.0
    %357 = vmatprep.mubr.f32.mxu0 0.0
    %358 = vmatmul.mubr.f32.gmra.mxu0 %v36
    %v359 = vpop.f32.mrf.mxu0
    %v360 = vadd.f32 0.0, %v359
    %v361 = vpop.f32.mrf.mxu0
    %362 = vmatprep.mubr.f32.mxu0 0.0
    %363 = vmatmul.mubr.f32.gmra.mxu0 %v39
    %v364 = vpop.f32.mrf.mxu0
    %v365 = vadd.f32 0.0, %v364
    %v366 = vpop.f32.mrf.mxu0
    %367 = vdwg.mxu0
    %v368 = vld [vmem:[%s5] sm:$0xff]
    %v369 = vld [vmem:[%s5 + $0x8] sm:$0xff]
    %v370 = vld [vmem:[%s6] sm:$0x1]
    %v372 = vlaneseq
    %v373 = vshrl.u32 %v372, 7
    %v374 = vsub.s32 0, %v373
    %v375 = vrot.slane %v370, %v374
    %v378 = vsel %vm34, %v360, 0
    %v381 = vsel %vm34, %v365, 0
    %383 = vmatprep.subr.mxu0 0.0
    %384 = vmatpush1.msra.mxu0 0.0
    %385 = vmatprep.subr.mxu0 0.0
    %386 = vmatpush1.msra.mxu0 0.0
    %387 = vmatprep.subr.mxu0 0.0
    %388 = vmatpush1.msra.mxu0 0.0
    %389 = vmatprep.subr.mxu0 0.0
    %390 = vmatpush1.msra.mxu0 0.0
    %391 = vmatprep.subr.mxu0 0.0
    %392 = vmatpush1.msra.mxu0 0.0
    %393 = vmatprep.subr.mxu0 0.0
    %394 = vmatpush1.msra.mxu0 0.0
    %395 = vmatprep.subr.mxu0 0.0
    %396 = vmatpush1.msra.mxu0 0.0
    %397 = vmatprep.subr.mxu0 0.0
    %398 = vmatpush1.msra.mxu0 0.0
    %399 = vmatprep.subr.mxu0 0.0
    %400 = vmatpush1.msra.mxu0 0.0
    %401 = vmatprep.subr.mxu0 0.0
    %402 = vmatpush1.msra.mxu0 0.0
    %403 = vmatprep.subr.mxu0 0.0
    %404 = vmatpush1.msra.mxu0 0.0
    %405 = vmatprep.subr.mxu0 0.0
    %406 = vmatpush1.msra.mxu0 0.0
    %407 = vmatprep.subr.mxu0 0.0
    %408 = vmatpush1.msra.mxu0 0.0
    %409 = vmatprep.subr.mxu0 0.0
    %410 = vmatpush1.msra.mxu0 0.0
    %411 = vmatprep.subr.mxu0 0.0
    %412 = vmatpush1.msra.mxu0 %v369
    %413 = vmatprep.subr.mxu0 0.0
    %414 = vmatpush1.msra.mxu0 %v368
    %415 = vmatprep.subr.mxu0 0.0
    %416 = vmatpush2.msra.mxu0 0.0
    %417 = vmatprep.subr.mxu0 0.0
    %418 = vmatpush2.msra.mxu0 0.0
    %419 = vmatprep.subr.mxu0 0.0
    %420 = vmatpush2.msra.mxu0 0.0
    %421 = vmatprep.subr.mxu0 0.0
    %422 = vmatpush2.msra.mxu0 0.0
    %423 = vmatprep.subr.mxu0 0.0
    %424 = vmatpush2.msra.mxu0 0.0
    %425 = vmatprep.subr.mxu0 0.0
    %426 = vmatpush2.msra.mxu0 0.0
    %427 = vmatprep.subr.mxu0 0.0
    %428 = vmatpush2.msra.mxu0 0.0
    %429 = vmatprep.subr.mxu0 0.0
    %430 = vmatpush2.msra.mxu0 0.0
    %431 = vmatprep.subr.mxu0 0.0
    %432 = vmatpush2.msra.mxu0 0.0
    %433 = vmatprep.subr.mxu0 0.0
    %434 = vmatpush2.msra.mxu0 0.0
    %435 = vmatprep.subr.mxu0 0.0
    %436 = vmatpush2.msra.mxu0 0.0
    %437 = vmatprep.subr.mxu0 0.0
    %438 = vmatpush2.msra.mxu0 0.0
    %439 = vmatprep.subr.mxu0 0.0
    %440 = vmatpush2.msra.mxu0 0.0
    %441 = vmatprep.subr.mxu0 0.0
    %442 = vmatpush2.msra.mxu0 0.0
    %443 = vmatprep.subr.mxu0 0.0
    %444 = vmatpush2.msra.mxu0 0.0
    %445 = vmatprep.subr.mxu0 0.0
    %446 = vmatpush2.msra.mxu0 0.0
    %447 = vmatprep.mubr.f32.mxu0 0.0
    %448 = vmatmul.mubr.f32.gmra.mxu0 %v378
    %v449 = vpop.f32.mrf.mxu0
    %v450 = vadd.f32 %v375, %v449
    %v451 = vpop.f32.mrf.mxu0
    %452 = vmatprep.mubr.f32.mxu0 0.0
    %453 = vmatmul.mubr.f32.gmra.mxu0 %v381
    %v454 = vpop.f32.mrf.mxu0
    %v455 = vadd.f32 %v375, %v454
    %v456 = vpop.f32.mrf.mxu0
    %457 = vdwg.mxu0
    %v458 = vld [vmem:[%s7] sm:$0xff]
    %v459 = vld [vmem:[%s7 + $0x8] sm:$0xff]
    %v461 = vsel %vm34, %v291, 0
    %v464 = vsel %vm34, %v292, 0
    %466 = vmatprep.subr.mxu0 0.0
    %467 = vmatpush1.msra.mxu0 0.0
    %468 = vmatprep.subr.mxu0 0.0
    %469 = vmatpush1.msra.mxu0 0.0
    %470 = vmatprep.subr.mxu0 0.0
    %471 = vmatpush1.msra.mxu0 0.0
    %472 = vmatprep.subr.mxu0 0.0
    %473 = vmatpush1.msra.mxu0 0.0
    %474 = vmatprep.subr.mxu0 0.0
    %475 = vmatpush1.msra.mxu0 0.0
    %476 = vmatprep.subr.mxu0 0.0
    %477 = vmatpush1.msra.mxu0 0.0
    %478 = vmatprep.subr.mxu0 0.0
    %479 = vmatpush1.msra.mxu0 0.0
    %480 = vmatprep.subr.mxu0 0.0
    %481 = vmatpush1.msra.mxu0 0.0
    %482 = vmatprep.subr.mxu0 0.0
    %483 = vmatpush1.msra.mxu0 0.0
    %484 = vmatprep.subr.mxu0 0.0
    %485 = vmatpush1.msra.mxu0 0.0
    %486 = vmatprep.subr.mxu0 0.0
    %487 = vmatpush1.msra.mxu0 0.0
    %488 = vmatprep.subr.mxu0 0.0
    %489 = vmatpush1.msra.mxu0 0.0
    %490 = vmatprep.subr.mxu0 0.0
    %491 = vmatpush1.msra.mxu0 0.0
    %492 = vmatprep.subr.mxu0 0.0
    %493 = vmatpush1.msra.mxu0 0.0
    %494 = vmatprep.subr.mxu0 0.0
    %495 = vmatpush1.msra.mxu0 %v459
    %496 = vmatprep.subr.mxu0 0.0
    %497 = vmatpush1.msra.mxu0 %v458
    %498 = vmatprep.subr.mxu0 0.0
    %499 = vmatpush2.msra.mxu0 0.0
    %500 = vmatprep.subr.mxu0 0.0
    %501 = vmatpush2.msra.mxu0 0.0
    %502 = vmatprep.subr.mxu0 0.0
    %503 = vmatpush2.msra.mxu0 0.0
    %504 = vmatprep.subr.mxu0 0.0
    %505 = vmatpush2.msra.mxu0 0.0
    %506 = vmatprep.subr.mxu0 0.0
    %507 = vmatpush2.msra.mxu0 0.0
    %508 = vmatprep.subr.mxu0 0.0
    %509 = vmatpush2.msra.mxu0 0.0
    %510 = vmatprep.subr.mxu0 0.0
    %511 = vmatpush2.msra.mxu0 0.0
    %512 = vmatprep.subr.mxu0 0.0
    %513 = vmatpush2.msra.mxu0 0.0
    %514 = vmatprep.subr.mxu0 0.0
    %515 = vmatpush2.msra.mxu0 0.0
    %516 = vmatprep.subr.mxu0 0.0
    %517 = vmatpush2.msra.mxu0 0.0
    %518 = vmatprep.subr.mxu0 0.0
    %519 = vmatpush2.msra.mxu0 0.0
    %520 = vmatprep.subr.mxu0 0.0
    %521 = vmatpush2.msra.mxu0 0.0
    %522 = vmatprep.subr.mxu0 0.0
    %523 = vmatpush2.msra.mxu0 0.0
    %524 = vmatprep.subr.mxu0 0.0
    %525 = vmatpush2.msra.mxu0 0.0
    %526 = vmatprep.subr.mxu0 0.0
    %527 = vmatpush2.msra.mxu0 0.0
    %528 = vmatprep.subr.mxu0 0.0
    %529 = vmatpush2.msra.mxu0 0.0
    %530 = vmatprep.mubr.f32.mxu0 0.0
    %531 = vmatmul.mubr.f32.gmra.mxu0 %v461
    %v532 = vpop.f32.mrf.mxu0
    %v533 = vadd.f32 0.0, %v532
    %v534 = vpop.f32.mrf.mxu0
    %535 = vmatprep.mubr.f32.mxu0 0.0
    %536 = vmatmul.mubr.f32.gmra.mxu0 %v464
    %v537 = vpop.f32.mrf.mxu0
    %v538 = vadd.f32 0.0, %v537
    %v539 = vpop.f32.mrf.mxu0
    %540 = vdwg.mxu0
    %v541 = vadd.f32 %v450, %v533
    %v542 = vadd.f32 %v455, %v538
    %v543 = vmax.f32 %v541, 0.0
    %v544 = vmax.f32 %v542, 0.0
    %545 = vst.msk [vmem:[#allocation2] sm:$0xff] %vm34, %v543
    %546 = vst.msk [vmem:[#allocation2 + $0x8] sm:$0xff] %vm34, %v544
    // Predicated region
    $region34: #{graphsage_forward.1} parent=1 // pred_check
      _
    $region35: #{graphsage_forward.1} parent=1 // pred_check_branch
      %548 = sbr.rel (0) target = $region37
    $region36: #{graphsage_forward.1} parent=1 // pred_region
      %s550 = ssub.s32 256, 256
      %551 = vsyncadd [#allocation3], %s550
      %s552 = sshll.u32 [#allocation2], 4
      %s553 = int_to_ptr.vmem [resolvable:$true] %s552
      %558 = dma.vmem_to_hbm [thread:$0]  %s553, 256, %s8, [#allocation3], 128, 128, 8
    $region37: #{graphsage_forward.1} parent=1 // pred_fallthru
      _
    // Predicated region
    $region38: #{graphsage_forward.1} parent=1 // pred_check
      _
    $region39: #{graphsage_forward.1} parent=1 // pred_check_branch
      %560 = sbr.rel (0) target = $region41
    $region40: #{graphsage_forward.1} parent=1 // pred_region
      %561 = dma.done [#allocation3], 256
    $region41: #{graphsage_forward.1} parent=1 // pred_fallthru
      _
    %562 = vsyncpa [#allocation3], 1

</llo_original>
